<compile_context>
chip_gen: v7x
topology: tpu7x:2x2x1
jax: 0.10.0
libtpu: 0.0.40
codegen_flags: <defaults>
</compile_context>

<pallas_src>
import functools

import jax
import jax.numpy as jnp
from jax.experimental import pallas as pl
from jax.experimental.pallas import tpu as pltpu

ACTION_SCALE = 1.0   # action_space is None in the reference module
ACTION_BIAS = 0.0

_LANE = 128
_SUBLANE = 8


def _policy_kernel(x_ref, w1_ref, b1_ref, w2_ref, b2_ref, w3_ref, b3_ref, out_ref,
                   *, action_scale, action_bias):
    mm_dtype = w1_ref.dtype
    x = x_ref[...]  # already in mm_dtype (cast once in the wrapper)

    # linear1 + ReLU  (MXU accumulates f32; elementwise stays f32 -> v5e-safe)
    h1 = jnp.dot(x, w1_ref[...], preferred_element_type=jnp.float32) + b1_ref[...]
    h1 = jnp.maximum(h1, 0.0)

    # linear2 + ReLU
    h2 = jnp.dot(h1.astype(mm_dtype), w2_ref[...],
                 preferred_element_type=jnp.float32) + b2_ref[...]
    h2 = jnp.maximum(h2, 0.0)

    # mean head (lane-padded to 128 cols) + tanh squash (EUP)
    m = jnp.dot(h2.astype(mm_dtype), w3_ref[...],
                preferred_element_type=jnp.float32) + b3_ref[...]
    y = jnp.tanh(m)
    if action_scale != 1.0:          # trace-time elision of trivial scale
        y = y * action_scale
    if action_bias != 0.0:           # trace-time elision of trivial bias
        y = y + action_bias
    out_ref[...] = y.astype(out_ref.dtype)


def deterministic_policy_forward(state, params, *, block_b=512,
                                 matmul_dtype=jnp.float32,
                                 action_scale=ACTION_SCALE,
                                 action_bias=ACTION_BIAS):
    """Forward pass of DeterministicPolicy as a single Pallas TPU kernel.

    state : (B, num_inputs) float32
    params: dict with w1 (in,hid), b1 (1,hid), w2 (hid,hid), b2 (1,hid),
            w3 (hid,act), b3 (1,act)
    returns: (B, num_actions) float32
    """
    B, num_inputs = state.shape
    hidden = params["w1"].shape[1]
    num_actions = params["w3"].shape[1]

    # --- lane-pad the mean head to a dense multiple-of-128 output ---
    n_pad = max(_LANE, pl.cdiv(num_actions, _LANE) * _LANE)
    w3 = params["w3"]
    b3 = params["b3"]
    if n_pad != num_actions:
        w3 = jnp.pad(w3, ((0, 0), (0, n_pad - num_actions)))
        b3 = jnp.pad(b3, ((0, 0), (0, n_pad - num_actions)))

    # --- cast matmul operands once (bf16 on v6e/v7x); biases stay f32 ---
    x = state.astype(matmul_dtype)
    w1 = params["w1"].astype(matmul_dtype)
    w2 = params["w2"].astype(matmul_dtype)
    w3 = w3.astype(matmul_dtype)
    b1 = params["b1"].astype(jnp.float32)
    b2 = params["b2"].astype(jnp.float32)
    b3 = b3.astype(jnp.float32)

    # --- batch tiling: TB multiple of 8, pad B up to a grid multiple ---
    block_b = max(_SUBLANE, (block_b // _SUBLANE) * _SUBLANE)
    tb = min(block_b, max(_SUBLANE, pl.cdiv(B, _SUBLANE) * _SUBLANE))
    b_pad = pl.cdiv(B, tb) * tb
    if b_pad != B:
        x = jnp.pad(x, ((0, b_pad - B), (0, 0)))
    grid = (b_pad // tb,)

    weight_res = lambda i: (0, 0)    # VMEM-resident across all grid steps
    in_specs = [
        pl.BlockSpec((tb, num_inputs), lambda i: (i, 0)),
        pl.BlockSpec((num_inputs, hidden), weight_res),
        pl.BlockSpec((1, hidden), weight_res),
        pl.BlockSpec((hidden, hidden), weight_res),
        pl.BlockSpec((1, hidden), weight_res),
        pl.BlockSpec((hidden, n_pad), weight_res),
        pl.BlockSpec((1, n_pad), weight_res),
    ]
    out_specs = pl.BlockSpec((tb, n_pad), lambda i: (i, 0))

    mm_itemsize = jnp.dtype(matmul_dtype).itemsize
    cost = pl.CostEstimate(
        flops=2 * b_pad * (num_inputs * hidden + hidden * hidden + hidden * n_pad),
        transcendentals=b_pad * n_pad,
        bytes_accessed=(
            (num_inputs * hidden + hidden * hidden + hidden * n_pad) * mm_itemsize
            + (2 * hidden + n_pad) * 4
            + b_pad * num_inputs * mm_itemsize
            + b_pad * n_pad * 4
        ),
    )

    kernel = functools.partial(_policy_kernel,
                               action_scale=float(action_scale),
                               action_bias=float(action_bias))

    out = pl.pallas_call(
        kernel,
        out_shape=jax.ShapeDtypeStruct((b_pad, n_pad), jnp.float32),
        grid=grid,
        in_specs=in_specs,
        out_specs=out_specs,
        compiler_params=pltpu.CompilerParams(
            dimension_semantics=("parallel",),
            vmem_limit_bytes=64 << 20),
        cost_estimate=cost,
    )(x, w1, b1, w2, b2, w3, b3)

    return out[:B, :num_actions]


def init_params(key, num_inputs, num_actions, hidden_dim=256):
    """Xavier-uniform (gain=1) weights, zero biases — matches weights_init_."""
    def xavier(k, fan_in, fan_out):
        bound = jnp.sqrt(6.0 / (fan_in + fan_out))
        return jax.random.uniform(
            k, (fan_in, fan_out), dtype=jnp.float32, minval=-bound, maxval=bound
        )

    k1, k2, k3 = jax.random.split(key, 3)
    return {
        "w1": xavier(k1, num_inputs, hidden_dim),
        "b1": jnp.zeros((1, hidden_dim), jnp.float32),
        "w2": xavier(k2, hidden_dim, hidden_dim),
        "b2": jnp.zeros((1, hidden_dim), jnp.float32),
        "w3": xavier(k3, hidden_dim, num_actions),
        "b3": jnp.zeros((1, num_actions), jnp.float32),
    }


def _reference_forward(state, params):
    h1 = jnp.maximum(state @ params["w1"] + params["b1"], 0.0)
    h2 = jnp.maximum(h1 @ params["w2"] + params["b2"], 0.0)
    return jnp.tanh(h2 @ params["w3"] + params["b3"]) * ACTION_SCALE + ACTION_BIAS


if __name__ == "__main__":
    key = jax.random.PRNGKey(0)
    k_state, k_params = jax.random.split(key)

    batch = 8
    num_inputs = 16
    num_actions = 8
    hidden_dim = 256

    state = jax.random.normal(k_state, (batch, num_inputs), dtype=jnp.float32)
    params = init_params(k_params, num_inputs, num_actions, hidden_dim)
    ref = _reference_forward(state, params)

    # f32 matmuls: tight check vs. pure-JAX reference
    out = deterministic_policy_forward(state, params, matmul_dtype=jnp.float32)
    out = jax.block_until_ready(out)
    assert out.shape == (batch, num_actions)
    assert jnp.allclose(out, ref, atol=1e-5, rtol=1e-5)

    # bf16 matmul operands (v6e/v7x MXU rate), f32 accumulation: loose check
    out_bf16 = deterministic_policy_forward(state, params, matmul_dtype=jnp.bfloat16)
    out_bf16 = jax.block_until_ready(out_bf16)
    assert out_bf16.shape == (batch, num_actions)
    assert jnp.allclose(out_bf16, ref, atol=3e-2, rtol=3e-2)

    # multi-tile batch (exercises the grid + padding path)
    batch_big = 1000
    state_big = jax.random.normal(k_state, (batch_big, num_inputs), dtype=jnp.float32)
    ref_big = _reference_forward(state_big, params)
    out_big = deterministic_policy_forward(state_big, params, block_b=256,
                                           matmul_dtype=jnp.float32)
    out_big = jax.block_until_ready(out_big)
    assert out_big.shape == (batch_big, num_actions)
    assert jnp.allclose(out_big, ref_big, atol=1e-5, rtol=1e-5)

    print("KERNEL_OK")
</pallas_src>

<mosaic_0001>
module attributes {stable_mosaic.version = 11 : i64} {
  func.func @_policy_kernel(%arg0: i32, %arg1: memref<8x16xf32, #tpu.memory_space<vmem>>, %arg2: memref<16x256xf32, #tpu.memory_space<vmem>>, %arg3: memref<1x256xf32, #tpu.memory_space<vmem>>, %arg4: memref<256x256xf32, #tpu.memory_space<vmem>>, %arg5: memref<1x256xf32, #tpu.memory_space<vmem>>, %arg6: memref<256x128xf32, #tpu.memory_space<vmem>>, %arg7: memref<1x128xf32, #tpu.memory_space<vmem>>, %arg8: memref<8x128xf32, #tpu.memory_space<vmem>>) attributes {dimension_semantics = [#tpu.dimension_semantics<parallel>], iteration_bounds = array<i64: 1>, scalar_prefetch = 0 : i64, scratch_operands = 0 : i64, tpu.core_type = #tpu.core_type<tc>, window_params = [{transform_indices = @transform_0, window_bounds = array<i64: 8, 16>}, {pipeline_mode = #tpu.pipeline_mode<synchronous>, transform_indices = @transform_1, window_bounds = array<i64: 16, 256>}, {pipeline_mode = #tpu.pipeline_mode<synchronous>, transform_indices = @transform_2, window_bounds = array<i64: 1, 256>}, {pipeline_mode = #tpu.pipeline_mode<synchronous>, transform_indices = @transform_3, window_bounds = array<i64: 256, 256>}, {pipeline_mode = #tpu.pipeline_mode<synchronous>, transform_indices = @transform_4, window_bounds = array<i64: 1, 256>}, {pipeline_mode = #tpu.pipeline_mode<synchronous>, transform_indices = @transform_5, window_bounds = array<i64: 256, 128>}, {pipeline_mode = #tpu.pipeline_mode<synchronous>, transform_indices = @transform_6, window_bounds = array<i64: 1, 128>}, {transform_indices = @transform_7, window_bounds = array<i64: 8, 128>}]} {
    %c0 = arith.constant 0 : index
    %c0_0 = arith.constant 0 : index
    %0 = vector.load %arg1[%c0, %c0_0] : memref<8x16xf32, #tpu.memory_space<vmem>>, vector<8x16xf32>
    %c0_1 = arith.constant 0 : index
    %c0_2 = arith.constant 0 : index
    %1 = vector.load %arg2[%c0_1, %c0_2] : memref<16x256xf32, #tpu.memory_space<vmem>>, vector<16x256xf32>
    %cst = arith.constant dense<0.000000e+00> : vector<8x256xf32>
    %2 = tpu.matmul %0, %1, %cst {dimension_numbers = #tpu.dot_dimension_numbers<[1], [0], [0], [1], [0, 0, 1, 1], [], []>} : vector<8x16xf32>, vector<16x256xf32>, vector<8x256xf32> -> vector<8x256xf32>
    %c0_3 = arith.constant 0 : index
    %c0_4 = arith.constant 0 : index
    %3 = vector.load %arg3[%c0_3, %c0_4] : memref<1x256xf32, #tpu.memory_space<vmem>>, vector<1x256xf32>
    %4 = vector.broadcast %3 : vector<1x256xf32> to vector<8x256xf32>
    %5 = arith.addf %2, %4 : vector<8x256xf32>
    %cst_5 = arith.constant 0.000000e+00 : f32
    %6 = vector.broadcast %cst_5 : f32 to vector<8x256xf32>
    %7 = arith.maximumf %5, %6 : vector<8x256xf32>
    %c0_6 = arith.constant 0 : index
    %c0_7 = arith.constant 0 : index
    %8 = vector.load %arg4[%c0_6, %c0_7] : memref<256x256xf32, #tpu.memory_space<vmem>>, vector<256x256xf32>
    %cst_8 = arith.constant dense<0.000000e+00> : vector<8x256xf32>
    %9 = tpu.matmul %7, %8, %cst_8 {dimension_numbers = #tpu.dot_dimension_numbers<[1], [0], [0], [1], [0, 0, 1, 1], [], []>} : vector<8x256xf32>, vector<256x256xf32>, vector<8x256xf32> -> vector<8x256xf32>
    %c0_9 = arith.constant 0 : index
    %c0_10 = arith.constant 0 : index
    %10 = vector.load %arg5[%c0_9, %c0_10] : memref<1x256xf32, #tpu.memory_space<vmem>>, vector<1x256xf32>
    %11 = vector.broadcast %10 : vector<1x256xf32> to vector<8x256xf32>
    %12 = arith.addf %9, %11 : vector<8x256xf32>
    %cst_11 = arith.constant 0.000000e+00 : f32
    %13 = vector.broadcast %cst_11 : f32 to vector<8x256xf32>
    %14 = arith.maximumf %12, %13 : vector<8x256xf32>
    %c0_12 = arith.constant 0 : index
    %c0_13 = arith.constant 0 : index
    %15 = vector.load %arg6[%c0_12, %c0_13] : memref<256x128xf32, #tpu.memory_space<vmem>>, vector<256x128xf32>
    %cst_14 = arith.constant dense<0.000000e+00> : vector<8x128xf32>
    %16 = tpu.matmul %14, %15, %cst_14 {dimension_numbers = #tpu.dot_dimension_numbers<[1], [0], [0], [1], [0, 0, 1, 1], [], []>} : vector<8x256xf32>, vector<256x128xf32>, vector<8x128xf32> -> vector<8x128xf32>
    %c0_15 = arith.constant 0 : index
    %c0_16 = arith.constant 0 : index
    %17 = vector.load %arg7[%c0_15, %c0_16] : memref<1x128xf32, #tpu.memory_space<vmem>>, vector<1x128xf32>
    %18 = vector.broadcast %17 : vector<1x128xf32> to vector<8x128xf32>
    %19 = arith.addf %16, %18 : vector<8x128xf32>
    %20 = math.tanh %19 : vector<8x128xf32>
    %c0_17 = arith.constant 0 : index
    %c0_18 = arith.constant 0 : index
    %21 = vector.load %arg8[%c0_17, %c0_18] : memref<8x128xf32, #tpu.memory_space<vmem>>, vector<8x128xf32>
    tpu.vector_store %arg8[%c0_17, %c0_18], %20 {strides = array<i32>} : memref<8x128xf32, #tpu.memory_space<vmem>>, vector<8x128xf32>,
    return
  }
  func.func @transform_0(%arg0: i32) -> (i32, i32) {
    %c0_i32 = arith.constant 0 : i32
    %c0_i32_0 = arith.constant 0 : i32
    return %arg0, %c0_i32 : i32, i32
  }
  func.func @transform_1(%arg0: i32) -> (i32, i32) {
    %c0_i32 = arith.constant 0 : i32
    %c0_i32_0 = arith.constant 0 : i32
    %c0_i32_1 = arith.constant 0 : i32
    return %c0_i32, %c0_i32_0 : i32, i32
  }
  func.func @transform_2(%arg0: i32) -> (i32, i32) {
    %c0_i32 = arith.constant 0 : i32
    %c0_i32_0 = arith.constant 0 : i32
    %c0_i32_1 = arith.constant 0 : i32
    return %c0_i32, %c0_i32_0 : i32, i32
  }
  func.func @transform_3(%arg0: i32) -> (i32, i32) {
    %c0_i32 = arith.constant 0 : i32
    %c0_i32_0 = arith.constant 0 : i32
    %c0_i32_1 = arith.constant 0 : i32
    return %c0_i32, %c0_i32_0 : i32, i32
  }
  func.func @transform_4(%arg0: i32) -> (i32, i32) {
    %c0_i32 = arith.constant 0 : i32
    %c0_i32_0 = arith.constant 0 : i32
    %c0_i32_1 = arith.constant 0 : i32
    return %c0_i32, %c0_i32_0 : i32, i32
  }
  func.func @transform_5(%arg0: i32) -> (i32, i32) {
    %c0_i32 = arith.constant 0 : i32
    %c0_i32_0 = arith.constant 0 : i32
    %c0_i32_1 = arith.constant 0 : i32
    return %c0_i32, %c0_i32_0 : i32, i32
  }
  func.func @transform_6(%arg0: i32) -> (i32, i32) {
    %c0_i32 = arith.constant 0 : i32
    %c0_i32_0 = arith.constant 0 : i32
    %c0_i32_1 = arith.constant 0 : i32
    return %c0_i32, %c0_i32_0 : i32, i32
  }
  func.func @transform_7(%arg0: i32) -> (i32, i32) {
    %c0_i32 = arith.constant 0 : i32
    %c0_i32_0 = arith.constant 0 : i32
    return %arg0, %c0_i32 : i32, i32
  }
}

</mosaic_0001>

<llo_original>
// kernel: tpu_custom_call.1
$region0: #{tpu_custom_call.1}
  #allocation0 [shape = 'u32[]', space=smem, size = 0x4, offset = 0x4, fixed_abs, tag = 'smem constant byte address 0x4 - core index']
  #allocation1 [shape = 'u32[144,128]{1,0:T(1,128)}', space=vmem, size = 0x12000, scoped, tag = 'internal scratch']
  %s0 = inlined_call_operand.hbm [shape: f32[8,16], index: 0, kind: input, shape index: {}]
  %s1 = inlined_call_operand.hbm [shape: f32[16,256], index: 1, kind: input, shape index: {}]
  %s2 = inlined_call_operand.hbm [shape: f32[1,256], index: 2, kind: input, shape index: {}]
  %s3 = inlined_call_operand.hbm [shape: f32[256,256], index: 3, kind: input, shape index: {}]
  %s4 = inlined_call_operand.hbm [shape: f32[1,256], index: 4, kind: input, shape index: {}]
  %s5 = inlined_call_operand.hbm [shape: f32[256,128], index: 5, kind: input, shape index: {}]
  %s6 = inlined_call_operand.hbm [shape: f32[1,128], index: 6, kind: input, shape index: {}]
  %s7 = inlined_call_operand.hbm [shape: f32[8,128], index: 7, kind: output, shape index: {}]
  %s8 = sld [smem:[#allocation0]]
  $region66: #{tpu_custom_call.1} parent=0
    _
  %s10 = ssub.s32 1, %s8
  %s11 = scalar_select 0, %s10, %s8
  $region1: #{tpu_custom_call.1} parent=0
    #allocation2 [shape = 'u8[4096]{0}', space=vmem, size = 0x1000, scoped, tag = 'input window, operand 0, single buffered']
    #allocation3 [shape = 's32[1]{0}', space=sflag, size = 0x4, scoped, tag = 'scoped memory for tpu_custom_call.1']
    #allocation4 [shape = 's32[1]{0}', space=sflag, size = 0x4, scoped, tag = 'scoped memory for tpu_custom_call.1']
    #allocation5 [shape = 'u8[16384]{0}', space=vmem, size = 0x4000, scoped, tag = 'input window, operand 1, single buffered']
    #allocation6 [shape = 's32[1]{0}', space=sflag, size = 0x4, scoped, tag = 'scoped memory for tpu_custom_call.1']
    #allocation7 [shape = 'u8[1024]{0}', space=vmem, size = 0x400, scoped, tag = 'input window, operand 2, single buffered']
    #allocation8 [shape = 'u8[262144]{0}', space=vmem, size = 0x40000, scoped, tag = 'input window, operand 3, single buffered']
    #allocation9 [shape = 's32[1]{0}', space=sflag, size = 0x4, scoped, tag = 'scoped memory for tpu_custom_call.1']
    #allocation10 [shape = 'u8[1024]{0}', space=vmem, size = 0x400, scoped, tag = 'input window, operand 4, single buffered']
    #allocation11 [shape = 'u8[131072]{0}', space=vmem, size = 0x20000, scoped, tag = 'input window, operand 5, single buffered']
    #allocation12 [shape = 's32[1]{0}', space=sflag, size = 0x4, scoped, tag = 'scoped memory for tpu_custom_call.1']
    #allocation13 [shape = 'u8[512]{0}', space=vmem, size = 0x400, scoped, tag = 'input window, operand 6, single buffered']
    #allocation14 [shape = 'u8[4096]{0}', space=vmem, size = 0x1000, scoped, tag = 'output window, operand 0, single buffered']
    %12 = vsyncpa [#allocation3], 0
    %13 = vsyncpa [#allocation6], 0
    %14 = vsyncpa [#allocation9], 0
    %15 = vsyncpa [#allocation12], 0
    %16 = vsyncpa [#allocation4], 0
    // Predicated region
    $region2: #{tpu_custom_call.1} parent=1 // pred_check
      _
    $region3: #{tpu_custom_call.1} parent=1 // pred_check_branch
      %18 = sbr.rel (0) target = $region5
    $region4: #{tpu_custom_call.1} parent=1 // pred_region
      %s20 = ssub.s32 128, 128
      %21 = vsyncadd [#allocation3], %s20
      %s23 = sshll.u32 [#allocation2], 4
      %s24 = int_to_ptr.vmem [resolvable:$true] %s23
      %26 = dma.hbm_to_vmem [thread:$0]  %s0, 128, %s24, [#allocation3]
    $region5: #{tpu_custom_call.1} parent=1 // pred_fallthru
      _
    // Predicated region
    $region6: #{tpu_custom_call.1} parent=1 // pred_check
      _
    $region7: #{tpu_custom_call.1} parent=1 // pred_check_branch
      %28 = sbr.rel (0) target = $region9
    $region8: #{tpu_custom_call.1} parent=1 // pred_region
      %s30 = ssub.s32 512, 512
      %31 = vsyncadd [#allocation6], %s30
      %s32 = sshll.u32 [#allocation5], 4
      %s33 = int_to_ptr.vmem [resolvable:$true] %s32
      %38 = dma.hbm_to_vmem [thread:$0]  %s1, 512, %s33, [#allocation6], 256, 256, 16
    $region9: #{tpu_custom_call.1} parent=1 // pred_fallthru
      _
    // Predicated region
    $region10: #{tpu_custom_call.1} parent=1 // pred_check
      _
    $region11: #{tpu_custom_call.1} parent=1 // pred_check_branch
      %40 = sbr.rel (0) target = $region13
    $region12: #{tpu_custom_call.1} parent=1 // pred_region
      %s42 = ssub.s32 32, 32
      %43 = vsyncadd [#allocation6], %s42
      %s45 = sshll.u32 [#allocation7], 4
      %s46 = int_to_ptr.vmem [resolvable:$true] %s45
      %48 = dma.hbm_to_vmem [thread:$0]  %s2, 32, %s46, [#allocation6]
    $region13: #{tpu_custom_call.1} parent=1 // pred_fallthru
      _
    // Predicated region
    $region14: #{tpu_custom_call.1} parent=1 // pred_check
      _
    $region15: #{tpu_custom_call.1} parent=1 // pred_check_branch
      %50 = sbr.rel (0) target = $region17
    $region16: #{tpu_custom_call.1} parent=1 // pred_region
      %s52 = ssub.s32 8192, 8192
      %53 = vsyncadd [#allocation9], %s52
      %s54 = sshll.u32 [#allocation8], 4
      %s55 = int_to_ptr.vmem [resolvable:$true] %s54
      %60 = dma.hbm_to_vmem [thread:$0]  %s3, 8192, %s55, [#allocation9], 256, 256, 16
    $region17: #{tpu_custom_call.1} parent=1 // pred_fallthru
      _
    // Predicated region
    $region18: #{tpu_custom_call.1} parent=1 // pred_check
      _
    $region19: #{tpu_custom_call.1} parent=1 // pred_check_branch
      %62 = sbr.rel (0) target = $region21
    $region20: #{tpu_custom_call.1} parent=1 // pred_region
      %s64 = ssub.s32 32, 32
      %65 = vsyncadd [#allocation9], %s64
      %s67 = sshll.u32 [#allocation10], 4
      %s68 = int_to_ptr.vmem [resolvable:$true] %s67
      %70 = dma.hbm_to_vmem [thread:$0]  %s4, 32, %s68, [#allocation9]
    $region21: #{tpu_custom_call.1} parent=1 // pred_fallthru
      _
    // Predicated region
    $region22: #{tpu_custom_call.1} parent=1 // pred_check
      _
    $region23: #{tpu_custom_call.1} parent=1 // pred_check_branch
      %72 = sbr.rel (0) target = $region25
    $region24: #{tpu_custom_call.1} parent=1 // pred_region
      %s74 = ssub.s32 4096, 4096
      %75 = vsyncadd [#allocation12], %s74
      %s76 = sshll.u32 [#allocation11], 4
      %s77 = int_to_ptr.vmem [resolvable:$true] %s76
      %82 = dma.hbm_to_vmem [thread:$0]  %s5, 4096, %s77, [#allocation12], 128, 128, 8
    $region25: #{tpu_custom_call.1} parent=1 // pred_fallthru
      _
    // Predicated region
    $region26: #{tpu_custom_call.1} parent=1 // pred_check
      _
    $region27: #{tpu_custom_call.1} parent=1 // pred_check_branch
      %84 = sbr.rel (0) target = $region29
    $region28: #{tpu_custom_call.1} parent=1 // pred_region
      %s86 = ssub.s32 16, 16
      %87 = vsyncadd [#allocation12], %s86
      %s89 = sshll.u32 [#allocation13], 4
      %s90 = int_to_ptr.vmem [resolvable:$true] %s89
      %92 = dma.hbm_to_vmem [thread:$0]  %s6, 16, %s90, [#allocation12]
    $region29: #{tpu_custom_call.1} parent=1 // pred_fallthru
      _
    // Predicated region
    $region30: #{tpu_custom_call.1} parent=1 // pred_check
      _
    $region31: #{tpu_custom_call.1} parent=1 // pred_check_branch
      %94 = sbr.rel (0) target = $region33
    $region32: #{tpu_custom_call.1} parent=1 // pred_region
      %95 = dma.done [#allocation3], 128
    $region33: #{tpu_custom_call.1} parent=1 // pred_fallthru
      _
    // Predicated region
    $region34: #{tpu_custom_call.1} parent=1 // pred_check
      _
    $region35: #{tpu_custom_call.1} parent=1 // pred_check_branch
      %97 = sbr.rel (0) target = $region37
    $region36: #{tpu_custom_call.1} parent=1 // pred_region
      %98 = dma.done [#allocation6], 512
    $region37: #{tpu_custom_call.1} parent=1 // pred_fallthru
      _
    // Predicated region
    $region38: #{tpu_custom_call.1} parent=1 // pred_check
      _
    $region39: #{tpu_custom_call.1} parent=1 // pred_check_branch
      %100 = sbr.rel (0) target = $region41
    $region40: #{tpu_custom_call.1} parent=1 // pred_region
      %101 = dma.done [#allocation6], 32
    $region41: #{tpu_custom_call.1} parent=1 // pred_fallthru
      _
    // Predicated region
    $region42: #{tpu_custom_call.1} parent=1 // pred_check
      _
    $region43: #{tpu_custom_call.1} parent=1 // pred_check_branch
      %103 = sbr.rel (0) target = $region45
    $region44: #{tpu_custom_call.1} parent=1 // pred_region
      %104 = dma.done [#allocation9], 8192
    $region45: #{tpu_custom_call.1} parent=1 // pred_fallthru
      _
    // Predicated region
    $region46: #{tpu_custom_call.1} parent=1 // pred_check
      _
    $region47: #{tpu_custom_call.1} parent=1 // pred_check_branch
      %106 = sbr.rel (0) target = $region49
    $region48: #{tpu_custom_call.1} parent=1 // pred_region
      %107 = dma.done [#allocation9], 32
    $region49: #{tpu_custom_call.1} parent=1 // pred_fallthru
      _
    // Predicated region
    $region50: #{tpu_custom_call.1} parent=1 // pred_check
      _
    $region51: #{tpu_custom_call.1} parent=1 // pred_check_branch
      %109 = sbr.rel (0) target = $region53
    $region52: #{tpu_custom_call.1} parent=1 // pred_region
      %110 = dma.done [#allocation12], 4096
    $region53: #{tpu_custom_call.1} parent=1 // pred_fallthru
      _
    // Predicated region
    $region54: #{tpu_custom_call.1} parent=1 // pred_check
      _
    $region55: #{tpu_custom_call.1} parent=1 // pred_check_branch
      %112 = sbr.rel (0) target = $region57
    $region56: #{tpu_custom_call.1} parent=1 // pred_region
      %113 = dma.done [#allocation12], 16
    $region57: #{tpu_custom_call.1} parent=1 // pred_fallthru
      _
    %v114 = vld [vmem:[#allocation2] sm:$0xff]
    %v115 = vld [vmem:[#allocation5] sm:$0xff]
    %v116 = vld [vmem:[#allocation5 + $0x8] sm:$0xff]
    %v117 = vld [vmem:[#allocation5 + $0x10] sm:$0xff]
    %v118 = vld [vmem:[#allocation5 + $0x18] sm:$0xff]
    %v119 = vld [vmem:[#allocation7] sm:$0x3]
    %v121 = vlaneseq
    %v122 = vshrl.u32 %v121, 7
    %v123 = vsub.s32 0, %v122
    %v124 = vrot.slane %v119, %v123
    %v125 = vlaneseq
    %v126 = vshrl.u32 %v125, 7
    %v127 = vsub.s32 1, %v126
    %v128 = vrot.slane %v119, %v127
    %vm131 = vcmask 130048
    %v133 = vsel %vm131, %v114, 0
    %135 = vmatprep.subr.mxu0 %v116
    %136 = vmatpush1.msra.mxu0 %v115
    %137 = vmatprep.subr.mxu0 %v118
    %138 = vmatpush1.msra.mxu0 %v117
    %139 = vmatprep.subr.mxu0 0.0
    %140 = vmatpush1.msra.mxu0 0.0
    %141 = vmatprep.subr.mxu0 0.0
    %142 = vmatpush1.msra.mxu0 0.0
    %143 = vmatprep.subr.mxu0 0.0
    %144 = vmatpush1.msra.mxu0 0.0
    %145 = vmatprep.subr.mxu0 0.0
    %146 = vmatpush1.msra.mxu0 0.0
    %147 = vmatprep.subr.mxu0 0.0
    %148 = vmatpush1.msra.mxu0 0.0
    %149 = vmatprep.subr.mxu0 0.0
    %150 = vmatpush1.msra.mxu0 0.0
    %151 = vmatprep.subr.mxu0 0.0
    %152 = vmatpush1.msra.mxu0 0.0
    %153 = vmatprep.subr.mxu0 0.0
    %154 = vmatpush1.msra.mxu0 0.0
    %155 = vmatprep.subr.mxu0 0.0
    %156 = vmatpush1.msra.mxu0 0.0
    %157 = vmatprep.subr.mxu0 0.0
    %158 = vmatpush1.msra.mxu0 0.0
    %159 = vmatprep.subr.mxu0 0.0
    %160 = vmatpush1.msra.mxu0 0.0
    %161 = vmatprep.subr.mxu0 0.0
    %162 = vmatpush1.msra.mxu0 0.0
    %163 = vmatprep.subr.mxu0 0.0
    %164 = vmatpush1.msra.mxu0 0.0
    %165 = vmatprep.subr.mxu0 0.0
    %166 = vmatpush1.msra.mxu0 0.0
    %167 = vmatprep.subr.mxu0 0.0
    %168 = vmatpush1.msra.mxu0 0.0
    %169 = vmatprep.subr.mxu0 0.0
    %170 = vmatpush1.msra.mxu0 0.0
    %171 = vmatprep.subr.mxu0 0.0
    %172 = vmatpush1.msra.mxu0 0.0
    %173 = vmatprep.subr.mxu0 0.0
    %174 = vmatpush1.msra.mxu0 0.0
    %175 = vmatprep.subr.mxu0 0.0
    %176 = vmatpush1.msra.mxu0 0.0
    %177 = vmatprep.subr.mxu0 0.0
    %178 = vmatpush1.msra.mxu0 0.0
    %179 = vmatprep.subr.mxu0 0.0
    %180 = vmatpush1.msra.mxu0 0.0
    %181 = vmatprep.subr.mxu0 0.0
    %182 = vmatpush1.msra.mxu0 0.0
    %183 = vmatprep.subr.mxu0 0.0
    %184 = vmatpush1.msra.mxu0 0.0
    %185 = vmatprep.subr.mxu0 0.0
    %186 = vmatpush1.msra.mxu0 0.0
    %187 = vmatprep.subr.mxu0 0.0
    %188 = vmatpush1.msra.mxu0 0.0
    %189 = vmatprep.subr.mxu0 0.0
    %190 = vmatpush1.msra.mxu0 0.0
    %191 = vmatprep.subr.mxu0 0.0
    %192 = vmatpush1.msra.mxu0 0.0
    %193 = vmatprep.subr.mxu0 0.0
    %194 = vmatpush1.msra.mxu0 0.0
    %195 = vmatprep.subr.mxu0 0.0
    %196 = vmatpush1.msra.mxu0 0.0
    %197 = vmatprep.subr.mxu0 0.0
    %198 = vmatpush1.msra.mxu0 0.0
    %199 = vmatprep.mubr.f32.mxu0 0.0
    %200 = vmatmul.mubr.f32.gmra.mrb[0].mxu0 %v133
    %v201 = vpop.f32.mrb[0].mxu0
    %v202 = vadd.f32 %v124, %v201
    %v203 = vpop.f32.mrb[0].mxu0
    %v204 = vadd.f32 %v128, %v203
    %205 = vdwg.mxu0
    %v206 = vmax.f32 %v202, 0.0
    %v207 = vmax.f32 %v204, 0.0
    %v208 = vld [vmem:[#allocation8] sm:$0xff]
    %v209 = vld [vmem:[#allocation8 + $0x8] sm:$0xff]
    %v210 = vld [vmem:[#allocation8 + $0x10] sm:$0xff]
    %v211 = vld [vmem:[#allocation8 + $0x18] sm:$0xff]
    %v212 = vld [vmem:[#allocation8 + $0x20] sm:$0xff]
    %v213 = vld [vmem:[#allocation8 + $0x28] sm:$0xff]
    %v214 = vld [vmem:[#allocation8 + $0x30] sm:$0xff]
    %v215 = vld [vmem:[#allocation8 + $0x38] sm:$0xff]
    %v216 = vld [vmem:[#allocation8 + $0x40] sm:$0xff]
    %v217 = vld [vmem:[#allocation8 + $0x48] sm:$0xff]
    %v218 = vld [vmem:[#allocation8 + $0x50] sm:$0xff]
    %v219 = vld [vmem:[#allocation8 + $0x58] sm:$0xff]
    %v220 = vld [vmem:[#allocation8 + $0x60] sm:$0xff]
    %v221 = vld [vmem:[#allocation8 + $0x68] sm:$0xff]
    %v222 = vld [vmem:[#allocation8 + $0x70] sm:$0xff]
    %v223 = vld [vmem:[#allocation8 + $0x78] sm:$0xff]
    %v224 = vld [vmem:[#allocation8 + $0x80] sm:$0xff]
    %v225 = vld [vmem:[#allocation8 + $0x88] sm:$0xff]
    %v226 = vld [vmem:[#allocation8 + $0x90] sm:$0xff]
    %v227 = vld [vmem:[#allocation8 + $0x98] sm:$0xff]
    %v228 = vld [vmem:[#allocation8 + $0xa0] sm:$0xff]
    %v229 = vld [vmem:[#allocation8 + $0xa8] sm:$0xff]
    %v230 = vld [vmem:[#allocation8 + $0xb0] sm:$0xff]
    %v231 = vld [vmem:[#allocation8 + $0xb8] sm:$0xff]
    %v232 = vld [vmem:[#allocation8 + $0xc0] sm:$0xff]
    %v233 = vld [vmem:[#allocation8 + $0xc8] sm:$0xff]
    %v234 = vld [vmem:[#allocation8 + $0xd0] sm:$0xff]
    %v235 = vld [vmem:[#allocation8 + $0xd8] sm:$0xff]
    %v236 = vld [vmem:[#allocation8 + $0xe0] sm:$0xff]
    %v237 = vld [vmem:[#allocation8 + $0xe8] sm:$0xff]
    %v238 = vld [vmem:[#allocation8 + $0xf0] sm:$0xff]
    %v239 = vld [vmem:[#allocation8 + $0xf8] sm:$0xff]
    %v240 = vld [vmem:[#allocation8 + $0x100] sm:$0xff]
    %v241 = vld [vmem:[#allocation8 + $0x108] sm:$0xff]
    %v242 = vld [vmem:[#allocation8 + $0x110] sm:$0xff]
    %v243 = vld [vmem:[#allocation8 + $0x118] sm:$0xff]
    %v244 = vld [vmem:[#allocation8 + $0x120] sm:$0xff]
    %v245 = vld [vmem:[#allocation8 + $0x128] sm:$0xff]
    %v246 = vld [vmem:[#allocation8 + $0x130] sm:$0xff]
    %v247 = vld [vmem:[#allocation8 + $0x138] sm:$0xff]
    %v248 = vld [vmem:[#allocation8 + $0x140] sm:$0xff]
    %v249 = vld [vmem:[#allocation8 + $0x148] sm:$0xff]
    %v250 = vld [vmem:[#allocation8 + $0x150] sm:$0xff]
    %v251 = vld [vmem:[#allocation8 + $0x158] sm:$0xff]
    %v252 = vld [vmem:[#allocation8 + $0x160] sm:$0xff]
    %v253 = vld [vmem:[#allocation8 + $0x168] sm:$0xff]
    %v254 = vld [vmem:[#allocation8 + $0x170] sm:$0xff]
    %v255 = vld [vmem:[#allocation8 + $0x178] sm:$0xff]
    %v256 = vld [vmem:[#allocation8 + $0x180] sm:$0xff]
    %v257 = vld [vmem:[#allocation8 + $0x188] sm:$0xff]
    %v258 = vld [vmem:[#allocation8 + $0x190] sm:$0xff]
    %v259 = vld [vmem:[#allocation8 + $0x198] sm:$0xff]
    %v260 = vld [vmem:[#allocation8 + $0x1a0] sm:$0xff]
    %v261 = vld [vmem:[#allocation8 + $0x1a8] sm:$0xff]
    %v262 = vld [vmem:[#allocation8 + $0x1b0] sm:$0xff]
    %v263 = vld [vmem:[#allocation8 + $0x1b8] sm:$0xff]
    %v264 = vld [vmem:[#allocation8 + $0x1c0] sm:$0xff]
    %v265 = vld [vmem:[#allocation8 + $0x1c8] sm:$0xff]
    %v266 = vld [vmem:[#allocation8 + $0x1d0] sm:$0xff]
    %v267 = vld [vmem:[#allocation8 + $0x1d8] sm:$0xff]
    %v268 = vld [vmem:[#allocation8 + $0x1e0] sm:$0xff]
    %v269 = vld [vmem:[#allocation8 + $0x1e8] sm:$0xff]
    %v270 = vld [vmem:[#allocation8 + $0x1f0] sm:$0xff]
    %v271 = vld [vmem:[#allocation8 + $0x1f8] sm:$0xff]
    %v272 = vld [vmem:[#allocation10] sm:$0x3]
    %v274 = vlaneseq
    %v275 = vshrl.u32 %v274, 7
    %v276 = vsub.s32 0, %v275
    %v277 = vrot.slane %v272, %v276
    %v278 = vlaneseq
    %v279 = vshrl.u32 %v278, 7
    %v280 = vsub.s32 1, %v279
    %v281 = vrot.slane %v272, %v280
    %284 = vmatprep.subr.mxu0 %v209
    %285 = vmatpush1.msra.mxu0 %v208
    %286 = vmatprep.subr.mxu0 %v211
    %287 = vmatpush1.msra.mxu0 %v210
    %288 = vmatprep.subr.mxu0 %v213
    %289 = vmatpush1.msra.mxu0 %v212
    %290 = vmatprep.subr.mxu0 %v215
    %291 = vmatpush1.msra.mxu0 %v214
    %292 = vmatprep.subr.mxu0 %v217
    %293 = vmatpush1.msra.mxu0 %v216
    %294 = vmatprep.subr.mxu0 %v219
    %295 = vmatpush1.msra.mxu0 %v218
    %296 = vmatprep.subr.mxu0 %v221
    %297 = vmatpush1.msra.mxu0 %v220
    %298 = vmatprep.subr.mxu0 %v223
    %299 = vmatpush1.msra.mxu0 %v222
    %300 = vmatprep.subr.mxu0 %v225
    %301 = vmatpush1.msra.mxu0 %v224
    %302 = vmatprep.subr.mxu0 %v227
    %303 = vmatpush1.msra.mxu0 %v226
    %304 = vmatprep.subr.mxu0 %v229
    %305 = vmatpush1.msra.mxu0 %v228
    %306 = vmatprep.subr.mxu0 %v231
    %307 = vmatpush1.msra.mxu0 %v230
    %308 = vmatprep.subr.mxu0 %v233
    %309 = vmatpush1.msra.mxu0 %v232
    %310 = vmatprep.subr.mxu0 %v235
    %311 = vmatpush1.msra.mxu0 %v234
    %312 = vmatprep.subr.mxu0 %v237
    %313 = vmatpush1.msra.mxu0 %v236
    %314 = vmatprep.subr.mxu0 %v239
    %315 = vmatpush1.msra.mxu0 %v238
    %316 = vmatprep.subr.mxu0 %v241
    %317 = vmatpush1.msra.mxu0 %v240
    %318 = vmatprep.subr.mxu0 %v243
    %319 = vmatpush1.msra.mxu0 %v242
    %320 = vmatprep.subr.mxu0 %v245
    %321 = vmatpush1.msra.mxu0 %v244
    %322 = vmatprep.subr.mxu0 %v247
    %323 = vmatpush1.msra.mxu0 %v246
    %324 = vmatprep.subr.mxu0 %v249
    %325 = vmatpush1.msra.mxu0 %v248
    %326 = vmatprep.subr.mxu0 %v251
    %327 = vmatpush1.msra.mxu0 %v250
    %328 = vmatprep.subr.mxu0 %v253
    %329 = vmatpush1.msra.mxu0 %v252
    %330 = vmatprep.subr.mxu0 %v255
    %331 = vmatpush1.msra.mxu0 %v254
    %332 = vmatprep.subr.mxu0 %v257
    %333 = vmatpush1.msra.mxu0 %v256
    %334 = vmatprep.subr.mxu0 %v259
    %335 = vmatpush1.msra.mxu0 %v258
    %336 = vmatprep.subr.mxu0 %v261
    %337 = vmatpush1.msra.mxu0 %v260
    %338 = vmatprep.subr.mxu0 %v263
    %339 = vmatpush1.msra.mxu0 %v262
    %340 = vmatprep.subr.mxu0 %v265
    %341 = vmatpush1.msra.mxu0 %v264
    %342 = vmatprep.subr.mxu0 %v267
    %343 = vmatpush1.msra.mxu0 %v266
    %344 = vmatprep.subr.mxu0 %v269
    %345 = vmatpush1.msra.mxu0 %v268
    %346 = vmatprep.subr.mxu0 %v271
    %347 = vmatpush1.msra.mxu0 %v270
    %348 = vmatprep.mubr.f32.mxu0 %v207
    %349 = vmatmul.mubr.f32.gmra.mrb[0].mxu0 %v206
    %v350 = vpop.f32.mrb[0].mxu0
    %v351 = vadd.f32 %v277, %v350
    %v352 = vpop.f32.mrb[0].mxu0
    %v353 = vadd.f32 %v281, %v352
    %354 = vdwg.mxu0
    %v355 = vmax.f32 %v351, 0.0
    %v356 = vmax.f32 %v353, 0.0
    %v357 = vld [vmem:[#allocation11] sm:$0xff]
    %v358 = vld [vmem:[#allocation11 + $0x8] sm:$0xff]
    %v359 = vld [vmem:[#allocation11 + $0x10] sm:$0xff]
    %v360 = vld [vmem:[#allocation11 + $0x18] sm:$0xff]
    %v361 = vld [vmem:[#allocation11 + $0x20] sm:$0xff]
    %v362 = vld [vmem:[#allocation11 + $0x28] sm:$0xff]
    %v363 = vld [vmem:[#allocation11 + $0x30] sm:$0xff]
    %v364 = vld [vmem:[#allocation11 + $0x38] sm:$0xff]
    %v365 = vld [vmem:[#allocation11 + $0x40] sm:$0xff]
    %v366 = vld [vmem:[#allocation11 + $0x48] sm:$0xff]
    %v367 = vld [vmem:[#allocation11 + $0x50] sm:$0xff]
    %v368 = vld [vmem:[#allocation11 + $0x58] sm:$0xff]
    %v369 = vld [vmem:[#allocation11 + $0x60] sm:$0xff]
    %v370 = vld [vmem:[#allocation11 + $0x68] sm:$0xff]
    %v371 = vld [vmem:[#allocation11 + $0x70] sm:$0xff]
    %v372 = vld [vmem:[#allocation11 + $0x78] sm:$0xff]
    %v373 = vld [vmem:[#allocation11 + $0x80] sm:$0xff]
    %v374 = vld [vmem:[#allocation11 + $0x88] sm:$0xff]
    %v375 = vld [vmem:[#allocation11 + $0x90] sm:$0xff]
    %v376 = vld [vmem:[#allocation11 + $0x98] sm:$0xff]
    %v377 = vld [vmem:[#allocation11 + $0xa0] sm:$0xff]
    %v378 = vld [vmem:[#allocation11 + $0xa8] sm:$0xff]
    %v379 = vld [vmem:[#allocation11 + $0xb0] sm:$0xff]
    %v380 = vld [vmem:[#allocation11 + $0xb8] sm:$0xff]
    %v381 = vld [vmem:[#allocation11 + $0xc0] sm:$0xff]
    %v382 = vld [vmem:[#allocation11 + $0xc8] sm:$0xff]
    %v383 = vld [vmem:[#allocation11 + $0xd0] sm:$0xff]
    %v384 = vld [vmem:[#allocation11 + $0xd8] sm:$0xff]
    %v385 = vld [vmem:[#allocation11 + $0xe0] sm:$0xff]
    %v386 = vld [vmem:[#allocation11 + $0xe8] sm:$0xff]
    %v387 = vld [vmem:[#allocation11 + $0xf0] sm:$0xff]
    %v388 = vld [vmem:[#allocation11 + $0xf8] sm:$0xff]
    %v389 = vld [vmem:[#allocation13] sm:$0x1]
    %v391 = vlaneseq
    %v392 = vshrl.u32 %v391, 7
    %v393 = vsub.s32 0, %v392
    %v394 = vrot.slane %v389, %v393
    %396 = vmatprep.subr.mxu0 0.0
    %397 = vmatpush1.msra.mxu0 %v357
    %398 = vmatprep.subr.mxu0 0.0
    %399 = vmatpush1.msra.mxu0 %v358
    %400 = vmatprep.subr.mxu0 0.0
    %401 = vmatpush1.msra.mxu0 %v359
    %402 = vmatprep.subr.mxu0 0.0
    %403 = vmatpush1.msra.mxu0 %v360
    %404 = vmatprep.subr.mxu0 0.0
    %405 = vmatpush1.msra.mxu0 %v361
    %406 = vmatprep.subr.mxu0 0.0
    %407 = vmatpush1.msra.mxu0 %v362
    %408 = vmatprep.subr.mxu0 0.0
    %409 = vmatpush1.msra.mxu0 %v363
    %410 = vmatprep.subr.mxu0 0.0
    %411 = vmatpush1.msra.mxu0 %v364
    %412 = vmatprep.subr.mxu0 0.0
    %413 = vmatpush1.msra.mxu0 %v365
    %414 = vmatprep.subr.mxu0 0.0
    %415 = vmatpush1.msra.mxu0 %v366
    %416 = vmatprep.subr.mxu0 0.0
    %417 = vmatpush1.msra.mxu0 %v367
    %418 = vmatprep.subr.mxu0 0.0
    %419 = vmatpush1.msra.mxu0 %v368
    %420 = vmatprep.subr.mxu0 0.0
    %421 = vmatpush1.msra.mxu0 %v369
    %422 = vmatprep.subr.mxu0 0.0
    %423 = vmatpush1.msra.mxu0 %v370
    %424 = vmatprep.subr.mxu0 0.0
    %425 = vmatpush1.msra.mxu0 %v371
    %426 = vmatprep.subr.mxu0 0.0
    %427 = vmatpush1.msra.mxu0 %v372
    %428 = vmatprep.subr.mxu0 0.0
    %429 = vmatpush1.msra.mxu0 %v373
    %430 = vmatprep.subr.mxu0 0.0
    %431 = vmatpush1.msra.mxu0 %v374
    %432 = vmatprep.subr.mxu0 0.0
    %433 = vmatpush1.msra.mxu0 %v375
    %434 = vmatprep.subr.mxu0 0.0
    %435 = vmatpush1.msra.mxu0 %v376
    %436 = vmatprep.subr.mxu0 0.0
    %437 = vmatpush1.msra.mxu0 %v377
    %438 = vmatprep.subr.mxu0 0.0
    %439 = vmatpush1.msra.mxu0 %v378
    %440 = vmatprep.subr.mxu0 0.0
    %441 = vmatpush1.msra.mxu0 %v379
    %442 = vmatprep.subr.mxu0 0.0
    %443 = vmatpush1.msra.mxu0 %v380
    %444 = vmatprep.subr.mxu0 0.0
    %445 = vmatpush1.msra.mxu0 %v381
    %446 = vmatprep.subr.mxu0 0.0
    %447 = vmatpush1.msra.mxu0 %v382
    %448 = vmatprep.subr.mxu0 0.0
    %449 = vmatpush1.msra.mxu0 %v383
    %450 = vmatprep.subr.mxu0 0.0
    %451 = vmatpush1.msra.mxu0 %v384
    %452 = vmatprep.subr.mxu0 0.0
    %453 = vmatpush1.msra.mxu0 %v385
    %454 = vmatprep.subr.mxu0 0.0
    %455 = vmatpush1.msra.mxu0 %v386
    %456 = vmatprep.subr.mxu0 0.0
    %457 = vmatpush1.msra.mxu0 %v387
    %458 = vmatprep.subr.mxu0 0.0
    %459 = vmatpush1.msra.mxu0 %v388
    %460 = vmatprep.mubr.f32.mxu0 %v356
    %461 = vmatmul.mubr.f32.gmra.mrb[0].mxu0 %v355
    %v462 = vpop.f32.mrb[0].mxu0
    %v463 = vadd.f32 %v394, %v462
    %v464 = vpop.f32.mrb[0].mxu0
    %465 = vdwg.mxu0
    %v466 = vtanh.pop %v463
    %467 = vst [vmem:[#allocation14] sm:$0xff] %v466
    // Predicated region
    $region58: #{tpu_custom_call.1} parent=1 // pred_check
      _
    $region59: #{tpu_custom_call.1} parent=1 // pred_check_branch
      %469 = sbr.rel (0) target = $region61
    $region60: #{tpu_custom_call.1} parent=1 // pred_region
      %s471 = ssub.s32 128, 128
      %472 = vsyncadd [#allocation4], %s471
      %s474 = sshll.u32 [#allocation14], 4
      %s475 = int_to_ptr.vmem [resolvable:$true] %s474
      %477 = dma.vmem_to_hbm [thread:$0]  %s475, 128, %s7, [#allocation4]
    $region61: #{tpu_custom_call.1} parent=1 // pred_fallthru
      _
    // Predicated region
    $region62: #{tpu_custom_call.1} parent=1 // pred_check
      _
    $region63: #{tpu_custom_call.1} parent=1 // pred_check_branch
      %479 = sbr.rel (0) target = $region65
    $region64: #{tpu_custom_call.1} parent=1 // pred_region
      %480 = dma.done [#allocation4], 128
    $region65: #{tpu_custom_call.1} parent=1 // pred_fallthru
      _
    %481 = vsyncpa [#allocation3], 1
    %482 = vsyncpa [#allocation6], 1
    %483 = vsyncpa [#allocation9], 1
    %484 = vsyncpa [#allocation12], 1
    %485 = vsyncpa [#allocation4], 1

</llo_original>
